<compile_context>
chip_gen: v6e
topology: v6e:2x2x1
jax: 0.10.0
libtpu: 0.0.40
codegen_flags: <defaults>
</compile_context>

<pallas_src>
import jax
import jax.numpy as jnp
from jax import lax
from jax.experimental import pallas as pl
from jax.experimental.pallas import tpu as pltpu


def _round_up(x, m):
    return ((x + m - 1) // m) * m


def _make_bce_kernel(B, N, TB, TN, nj, need_mask):
    def kernel(logits_ref, target_ref, out_ref, acc_ref):
        i = pl.program_id(0)  # row-block index ("parallel")
        j = pl.program_id(1)  # reduction (column-block) index ("arbitrary")

        @pl.when(j == 0)
        def _():
            acc_ref[...] = jnp.zeros_like(acc_ref)

        # Cast per-vreg inside the kernel (free on VPU, keeps HBM traffic narrow).
        x = logits_ref[...].astype(jnp.float32)
        y = target_ref[...].astype(jnp.float32)

        # Numerically stable BCEWithLogits (matches PyTorch):
        #   loss = max(x, 0) - x*y + log1p(exp(-|x|))
        loss = jnp.maximum(x, 0.0) - x * y + jnp.log1p(jnp.exp(-jnp.abs(x)))

        if need_mask:
            row = lax.broadcasted_iota(jnp.int32, (TB, TN), 0) + i * TB
            col = lax.broadcasted_iota(jnp.int32, (TB, TN), 1) + j * TN
            valid = (row < B) & (col < N)
            loss = jnp.where(valid, loss, 0.0)

        # Elementwise accumulate (VPU); defer the XLU reduce to the finalize step.
        acc_ref[...] += loss

        @pl.when(j == nj - 1)
        def _():
            s = jnp.sum(acc_ref[...])  # one cross-lane/sublane reduce per row-block
            r = lax.broadcasted_iota(jnp.int32, (8, 128), 0)
            c = lax.broadcasted_iota(jnp.int32, (8, 128), 1)
            # Place the partial sum at [0, 0] of a full (8,128) tile (layout-safe).
            out_ref[...] = jnp.where((r == 0) & (c == 0), s, 0.0)[None, :, :]

    return kernel


def multilabel_ce_loss(logits, y_target):
    """Mean BCE-with-logits over all elements of (B, N).

    Inputs are streamed in their native dtypes (e.g. f32 logits, bf16 one-hot);
    all math is f32 inside the kernel.
    """
    assert logits.shape == y_target.shape
    B, N = logits.shape

    # Sublane multiple: 8 for f32, 16 for bf16, 32 for int8 (packed dtypes).
    min_itemsize = min(jnp.dtype(logits.dtype).itemsize,
                       jnp.dtype(y_target.dtype).itemsize)
    sub = max(8, 32 // max(1, min_itemsize))

    TB = min(256, _round_up(B, sub))      # rows per block (sublane axis)
    TN = min(1024, _round_up(N, 128))     # cols per block (lane axis, lane-dense)
    ni = pl.cdiv(B, TB)
    nj = pl.cdiv(N, TN)
    need_mask = (B % TB != 0) or (N % TN != 0)

    kernel = _make_bce_kernel(B, N, TB, TN, nj, need_mask)

    partials = pl.pallas_call(
        kernel,
        out_shape=jax.ShapeDtypeStruct((ni, 8, 128), jnp.float32),
        grid_spec=pltpu.PrefetchScalarGridSpec(
            num_scalar_prefetch=0,
            grid=(ni, nj),
            in_specs=[
                pl.BlockSpec((TB, TN), lambda i, j: (i, j)),
                pl.BlockSpec((TB, TN), lambda i, j: (i, j)),
            ],
            out_specs=pl.BlockSpec((1, 8, 128), lambda i, j: (i, 0, 0)),
            scratch_shapes=[pltpu.VMEM((TB, TN), jnp.float32)],
        ),
        compiler_params=pltpu.CompilerParams(
            dimension_semantics=("parallel", "arbitrary"),
        ),
    )(logits, y_target)

    # Tiny final reduction + global-mean normalization in the wrapper.
    return jnp.sum(partials) / jnp.float32(B * N)


def convert_to_one_hot(batch_size, n_objects_per_graph, labels_per_graph):
    """Plain-JAX glue mirroring MultiLabelCELoss.convert_to_one_hot.
    Built directly as bfloat16 (0/1 are exactly representable) to halve the
    target operand's HBM traffic in the kernel."""
    # TODO(synk): for very large N, skip materializing the dense one-hot and
    # scalar-prefetch the label indices instead (sparse -x*y correction).
    n_total = int(sum(n_objects_per_graph))
    y_one_hot = jnp.zeros((batch_size, n_total), dtype=jnp.bfloat16)
    shift = 0
    for i in range(batch_size):
        idx = jnp.asarray(labels_per_graph[i], dtype=jnp.int32) + shift
        y_one_hot = y_one_hot.at[i, idx].set(1.0)
        shift += int(n_objects_per_graph[i])
    return y_one_hot


def _ref_loss(logits, y_target):
    y = y_target.astype(jnp.float32)
    x = logits.astype(jnp.float32)
    return jnp.mean(jnp.maximum(x, 0.0) - x * y + jnp.log1p(jnp.exp(-jnp.abs(x))))


if __name__ == "__main__":
    # --- Test 1: small synthetic "databatch" matching the PyTorch module ---
    batch_size = 2
    n_objects_per_graph = [8, 8]
    labels_per_graph = [[1, 3], [0, 5, 7]]  # per-graph (local) label indices
    n_total = sum(n_objects_per_graph)

    key = jax.random.PRNGKey(0)
    logits = jax.random.normal(key, (batch_size, n_total), dtype=jnp.float32)
    y_one_hot = convert_to_one_hot(batch_size, n_objects_per_graph, labels_per_graph)

    loss = jax.block_until_ready(multilabel_ce_loss(logits, y_one_hot))
    ref = _ref_loss(logits, y_one_hot)
    assert jnp.allclose(loss, ref, rtol=1e-5, atol=1e-6), (loss, ref)

    # --- Test 2: non-divisible shape exercising tiling, accumulation, masking ---
    B2, N2 = 16, 2500
    k1, k2 = jax.random.split(key)
    logits2 = jax.random.normal(k1, (B2, N2), dtype=jnp.float32)
    y2 = (jax.random.uniform(k2, (B2, N2)) < 0.05).astype(jnp.bfloat16)
    loss2 = jax.block_until_ready(multilabel_ce_loss(logits2, y2))
    ref2 = _ref_loss(logits2, y2)
    assert jnp.allclose(loss2, ref2, rtol=1e-5, atol=1e-6), (loss2, ref2)

    print("KERNEL_OK")
</pallas_src>

<mosaic_0001>
module attributes {stable_mosaic.version = 11 : i64} {
  func.func @kernel(%arg0: i32, %arg1: i32, %arg2: memref<16x128xf32, #tpu.memory_space<vmem>>, %arg3: memref<16x128xbf16, #tpu.memory_space<vmem>>, %arg4: memref<1x8x128xf32, #tpu.memory_space<vmem>>, %arg5: memref<16x128xf32, #tpu.memory_space<vmem>>) attributes {dimension_semantics = [#tpu.dimension_semantics<parallel>, #tpu.dimension_semantics<arbitrary>], iteration_bounds = array<i64: 1, 1>, scalar_prefetch = 0 : i64, scratch_operands = 1 : i64, tpu.core_type = #tpu.core_type<tc>, window_params = [{transform_indices = @transform_0, window_bounds = array<i64: 16, 128>}, {transform_indices = @transform_1, window_bounds = array<i64: 16, 128>}, {transform_indices = @transform_2, window_bounds = array<i64: 1, 8, 128>}]} {
    %c0_i32 = arith.constant 0 : i32
    %0 = arith.cmpi eq, %arg1, %c0_i32 : i32
    %1 = arith.extui %0 : i1 to i32
    %c0_i32_0 = arith.constant 0 : i32
    %2 = arith.cmpi ne, %1, %c0_i32_0 : i32
    scf.if %2 {
      %cst_13 = arith.constant 0.000000e+00 : f32
      %37 = vector.broadcast %cst_13 : f32 to vector<16x128xf32>
      %c0_14 = arith.constant 0 : index
      %c0_15 = arith.constant 0 : index
      %38 = vector.load %arg5[%c0_14, %c0_15] : memref<16x128xf32, #tpu.memory_space<vmem>>, vector<16x128xf32>
      tpu.vector_store %arg5[%c0_14, %c0_15], %37 {strides = array<i32>} : memref<16x128xf32, #tpu.memory_space<vmem>>, vector<16x128xf32>,
    } else {
    }
    %c0 = arith.constant 0 : index
    %c0_1 = arith.constant 0 : index
    %3 = vector.load %arg2[%c0, %c0_1] : memref<16x128xf32, #tpu.memory_space<vmem>>, vector<16x128xf32>
    %c0_2 = arith.constant 0 : index
    %c0_3 = arith.constant 0 : index
    %4 = vector.load %arg3[%c0_2, %c0_3] : memref<16x128xbf16, #tpu.memory_space<vmem>>, vector<16x128xbf16>
    %5 = arith.extf %4 : vector<16x128xbf16> to vector<16x128xf32>
    %cst = arith.constant 0.000000e+00 : f32
    %6 = vector.broadcast %cst : f32 to vector<16x128xf32>
    %7 = arith.maximumf %3, %6 : vector<16x128xf32>
    %8 = arith.mulf %3, %5 : vector<16x128xf32>
    %9 = arith.subf %7, %8 : vector<16x128xf32>
    %10 = math.absf %3 : vector<16x128xf32>
    %cst_4 = arith.constant 0.000000e+00 : f32
    %11 = vector.broadcast %cst_4 : f32 to vector<16x128xf32>
    %12 = arith.subf %11, %10 : vector<16x128xf32>
    %13 = math.exp %12 : vector<16x128xf32>
    %14 = math.log1p %13 : vector<16x128xf32>
    %15 = arith.addf %9, %14 : vector<16x128xf32>
    %16 = tpu.iota {dimensions = array<i32: 0>} : vector<16x128xi32>
    %c16_i32 = arith.constant 16 : i32
    %17 = arith.muli %arg0, %c16_i32 : i32
    %18 = vector.broadcast %17 : i32 to vector<16x128xi32>
    %19 = arith.addi %16, %18 : vector<16x128xi32>
    %20 = tpu.iota {dimensions = array<i32: 1>} : vector<16x128xi32>
    %c128_i32 = arith.constant 128 : i32
    %21 = arith.muli %arg1, %c128_i32 : i32
    %22 = vector.broadcast %21 : i32 to vector<16x128xi32>
    %23 = arith.addi %20, %22 : vector<16x128xi32>
    %c2_i32 = arith.constant 2 : i32
    %24 = vector.broadcast %c2_i32 : i32 to vector<16x128xi32>
    %25 = arith.cmpi slt, %19, %24 : vector<16x128xi32>
    %c16_i32_5 = arith.constant 16 : i32
    %26 = vector.broadcast %c16_i32_5 : i32 to vector<16x128xi32>
    %27 = arith.cmpi slt, %23, %26 : vector<16x128xi32>
    %28 = arith.andi %25, %27 : vector<16x128xi1>
    %cst_6 = arith.constant 0.000000e+00 : f32
    %29 = vector.broadcast %cst_6 : f32 to vector<16x128xf32>
    %30 = arith.select %28, %15, %29 : vector<16x128xi1>, vector<16x128xf32>
    %c0_7 = arith.constant 0 : index
    %c0_8 = arith.constant 0 : index
    %31 = vector.load %arg5[%c0_7, %c0_8] : memref<16x128xf32, #tpu.memory_space<vmem>>, vector<16x128xf32>
    %32 = arith.addf %31, %30 : vector<16x128xf32>
    %c0_9 = arith.constant 0 : index
    %c0_10 = arith.constant 0 : index
    %33 = vector.load %arg5[%c0_9, %c0_10] : memref<16x128xf32, #tpu.memory_space<vmem>>, vector<16x128xf32>
    tpu.vector_store %arg5[%c0_9, %c0_10], %32 {strides = array<i32>} : memref<16x128xf32, #tpu.memory_space<vmem>>, vector<16x128xf32>,
    %c0_i32_11 = arith.constant 0 : i32
    %34 = arith.cmpi eq, %arg1, %c0_i32_11 : i32
    %35 = arith.extui %34 : i1 to i32
    %c0_i32_12 = arith.constant 0 : i32
    %36 = arith.cmpi ne, %35, %c0_i32_12 : i32
    scf.if %36 {
      %c0_13 = arith.constant 0 : index
      %c0_14 = arith.constant 0 : index
      %37 = vector.load %arg5[%c0_13, %c0_14] : memref<16x128xf32, #tpu.memory_space<vmem>>, vector<16x128xf32>
      %38 = vector.shape_cast %37 : vector<16x128xf32> to vector<1x16x128xf32>
      %cst_15 = arith.constant dense<0.000000e+00> : vector<1xf32>
      %39 = vector.multi_reduction <add>, %38, %cst_15 [1, 2] : vector<1x16x128xf32> to vector<1xf32>
      %40 = vector.shape_cast %39 : vector<1xf32> to vector<1x1x1xf32>
      %41 = vector.extract %40[0, 0, 0] : f32 from vector<1x1x1xf32>
      %42 = tpu.iota {dimensions = array<i32: 0>} : vector<8x128xi32>
      %43 = tpu.iota {dimensions = array<i32: 1>} : vector<8x128xi32>
      %c0_i32_16 = arith.constant 0 : i32
      %44 = vector.broadcast %c0_i32_16 : i32 to vector<8x128xi32>
      %45 = arith.cmpi eq, %42, %44 : vector<8x128xi32>
      %c0_i32_17 = arith.constant 0 : i32
      %46 = vector.broadcast %c0_i32_17 : i32 to vector<8x128xi32>
      %47 = arith.cmpi eq, %43, %46 : vector<8x128xi32>
      %48 = arith.andi %45, %47 : vector<8x128xi1>
      %cst_18 = arith.constant 0.000000e+00 : f32
      %49 = vector.broadcast %41 : f32 to vector<8x128xf32>
      %50 = vector.broadcast %cst_18 : f32 to vector<8x128xf32>
      %51 = arith.select %48, %49, %50 : vector<8x128xi1>, vector<8x128xf32>
      %52 = vector.shape_cast %51 : vector<8x128xf32> to vector<1x8x128xf32>
      %c0_19 = arith.constant 0 : index
      %c0_20 = arith.constant 0 : index
      %c0_21 = arith.constant 0 : index
      %53 = vector.load %arg4[%c0_19, %c0_20, %c0_21] : memref<1x8x128xf32, #tpu.memory_space<vmem>>, vector<1x8x128xf32>
      tpu.vector_store %arg4[%c0_19, %c0_20, %c0_21], %52 {strides = array<i32>} : memref<1x8x128xf32, #tpu.memory_space<vmem>>, vector<1x8x128xf32>,
    } else {
    }
    return
  }
  func.func @transform_0(%arg0: i32, %arg1: i32) -> (i32, i32) {
    %c0_i32 = arith.constant 0 : i32
    return %arg0, %arg1 : i32, i32
  }
  func.func @transform_1(%arg0: i32, %arg1: i32) -> (i32, i32) {
    %c0_i32 = arith.constant 0 : i32
    return %arg0, %arg1 : i32, i32
  }
  func.func @transform_2(%arg0: i32, %arg1: i32) -> (i32, i32, i32) {
    %c0_i32 = arith.constant 0 : i32
    %c0_i32_0 = arith.constant 0 : i32
    %c0_i32_1 = arith.constant 0 : i32
    return %arg0, %c0_i32, %c0_i32_0 : i32, i32, i32
  }
}

</mosaic_0001>

<llo_original>
// kernel: tpu_custom_call.1
$region0: #{tpu_custom_call.1}
  #allocation0 [shape = 'u32[]', space=smem, size = 0x4, offset = 0x4, fixed_abs, tag = 'smem constant byte address 0x4 - core index']
  #allocation1 [shape = 'u32[144,128]{1,0:T(1,128)}', space=vmem, size = 0x12000, scoped, tag = 'internal scratch']
  #allocation2 [shape = 'f32[16,128]{1,0:T(8,128)}', space=vmem, size = 0x2000, scoped, tag = 'scratch operand']
  %s0 = inlined_call_operand.hbm [shape: f32[2,16], index: 0, kind: input, shape index: {}]
  %s1 = inlined_call_operand.vmem [shape: bf16[2,16], index: 1, kind: input, shape index: {}]
  %s2 = inlined_call_operand.hbm [shape: f32[1,8,128], index: 2, kind: output, shape index: {}]
  %s3 = sld [smem:[#allocation0]]
  $region30: #{tpu_custom_call.1} parent=0
    _
  %s5 = ssub.s32 1, %s3
  %s6 = scalar_select 0, %s5, %s3
  $region1: #{tpu_custom_call.1} parent=0
    #allocation3 [shape = 'u8[8192]{0}', space=vmem, size = 0x2000, scoped, tag = 'input window, operand 0, single buffered']
    #allocation4 [shape = 's32[1]{0}', space=sflag, size = 0x4, scoped, tag = 'scoped memory for tpu_custom_call.1']
    #allocation5 [shape = 's32[1]{0}', space=sflag, size = 0x4, scoped, tag = 'scoped memory for tpu_custom_call.1']
    #allocation6 [shape = 'u8[4096]{0}', space=vmem, size = 0x1000, scoped, tag = 'output window, operand 0, single buffered']
    %7 = vsyncpa [#allocation4], 0
    %8 = vsyncpa [#allocation5], 0
    // Predicated region
    $region2: #{tpu_custom_call.1} parent=1 // pred_check
      _
    $region3: #{tpu_custom_call.1} parent=1 // pred_check_branch
      %10 = sbr.rel (0) target = $region5
    $region4: #{tpu_custom_call.1} parent=1 // pred_region
      %s12 = ssub.s32 256, 32
      %13 = vsyncadd [#allocation4], %s12
      %s14 = sshll.u32 [#allocation3], 4
      %s15 = int_to_ptr.vmem [resolvable:$true] %s14
      %20 = dma.hbm_to_vmem [thread:$0]  %s0, 32, %s15, [#allocation4], 32, 32, 2
    $region5: #{tpu_custom_call.1} parent=1 // pred_fallthru
      _
    // Predicated region
    $region6: #{tpu_custom_call.1} parent=1 // pred_check
      _
    $region7: #{tpu_custom_call.1} parent=1 // pred_check_branch
      %22 = sbr.rel (0) target = $region9
    $region8: #{tpu_custom_call.1} parent=1 // pred_region
      _
    $region9: #{tpu_custom_call.1} parent=1 // pred_fallthru
      _
    // Predicated region
    $region10: #{tpu_custom_call.1} parent=1 // pred_check
      _
    $region11: #{tpu_custom_call.1} parent=1 // pred_check_branch
      %24 = sbr.rel (0) target = $region13
    $region12: #{tpu_custom_call.1} parent=1 // pred_region
      %25 = dma.done [#allocation4], 256
    $region13: #{tpu_custom_call.1} parent=1 // pred_fallthru
      _
    %p26 = scmp.eq.s32.totalorder 0, 0
    // Predicated region
    $region14: #{tpu_custom_call.1} parent=1 // pred_check
      %p27 = pneg %p26
    $region15: #{tpu_custom_call.1} parent=1 // pred_check_branch
      %29 = sbr.rel (%p27) target = $region17
    $region16: #{tpu_custom_call.1} parent=1 // pred_region
      %30 = vst [vmem:[#allocation2] sm:$0xff] 0.0
      %31 = vst [vmem:[#allocation2 + $0x8] sm:$0xff] 0.0
    $region17: #{tpu_custom_call.1} parent=1 // pred_fallthru
      _
    %v32 = vld [vmem:[#allocation3] sm:$0xff]
    %v33 = vld [vmem:[#allocation3 + $0x8] sm:$0xff]
    %v34 = vld [vmem:[%s1] sm:$0x1]
    %v35 = vld [vmem:[%s1 + $0x1] sm:$0x1]
    %v36 = vld [vmem:[%s1 + $0x2] sm:$0x1]
    %v37 = vld [vmem:[%s1 + $0x3] sm:$0x1]
    %v38 = vld [vmem:[%s1 + $0x4] sm:$0x1]
    %v39 = vld [vmem:[%s1 + $0x5] sm:$0x1]
    %v40 = vld [vmem:[%s1 + $0x6] sm:$0x1]
    %v41 = vld [vmem:[%s1 + $0x7] sm:$0x1]
    %v42 = vunpack.c.l.bf16 %v34
    %v43 = vunpack.c.l.bf16 %v35
    %v44 = vunpack.c.l.bf16 %v36
    %v45 = vunpack.c.l.bf16 %v37
    %v46 = vunpack.c.l.bf16 %v38
    %v47 = vunpack.c.l.bf16 %v39
    %v48 = vunpack.c.l.bf16 %v40
    %v49 = vunpack.c.l.bf16 %v41
    %v50 = vmax.f32 %v32, 0.0
    %v51 = vmax.f32 %v33, 0.0
    %v60 = vcombine.low %v42, %v43
    %v61 = vcombine.low %v44, %v45
    %v63 = vunpack.c.l.s4 1983009808
    %v64 = vunpack.c.0.s8 %v63
    %v65 = vlaneseq
    %v66 = vshrl.u32 %v65, 7
    %v67 = vsub.s32 %v64, %v66
    %v68 = vrot.slane %v60, %v67
    %v70 = vunpack.c.l.s4 1983009808
    %v71 = vunpack.c.0.s8 %v70
    %v72 = vlaneseq
    %v73 = vshrl.u32 %v72, 7
    %v74 = vsub.s32 %v71, %v73
    %v75 = vrot.slane %v61, %v74
    %v76 = vcombine.low %v68, %v75
    %v77 = vcombine.low %v46, %v47
    %v78 = vcombine.low %v48, %v49
    %v80 = vunpack.c.l.s4 1983009808
    %v81 = vunpack.c.0.s8 %v80
    %v82 = vlaneseq
    %v83 = vshrl.u32 %v82, 7
    %v84 = vsub.s32 %v81, %v83
    %v85 = vrot.slane %v77, %v84
    %v87 = vunpack.c.l.s4 1983009808
    %v88 = vunpack.c.0.s8 %v87
    %v89 = vlaneseq
    %v90 = vshrl.u32 %v89, 7
    %v91 = vsub.s32 %v88, %v90
    %v92 = vrot.slane %v78, %v91
    %v93 = vcombine.low %v85, %v92
    %v96 = vmul.f32 %v32, %v76
    %v97 = vmul.f32 %v33, %v93
    %v98 = vsub.f32 %v50, %v96
    %v99 = vsub.f32 %v51, %v97
    %v100 = vand.u32 2147483647, %v32
    %v101 = vand.u32 2147483647, %v33
    %v102 = vsub.f32 0.0, %v100
    %v103 = vsub.f32 0.0, %v101
    %v104 = vmul.f32 %v102, 1.442695
    %v105 = vpow.pop %v104
    %v106 = vmul.f32 %v103, 1.442695
    %v107 = vpow.pop %v106
    %v108 = vadd.f32 %v105, 1.0
    %v109 = vlog2.pop %v108
    %v110 = vmul.f32 %v109, 0.6931472
    %v111 = vmul.f32 -0.5, %v105
    %v112 = vadd.f32 %v111, 1.0
    %v113 = vmul.f32 %v112, %v105
    %v114 = vand.u32 2147483647, %v105
    %vm115 = vcmp.lt.f32.partialorder %v114, 0.0004427343
    %v116 = vsel %vm115, %v113, %v110
    %v117 = vadd.f32 %v107, 1.0
    %v118 = vlog2.pop %v117
    %v119 = vmul.f32 %v118, 0.6931472
    %v120 = vmul.f32 -0.5, %v107
    %v121 = vadd.f32 %v120, 1.0
    %v122 = vmul.f32 %v121, %v107
    %v123 = vand.u32 2147483647, %v107
    %vm124 = vcmp.lt.f32.partialorder %v123, 0.0004427343
    %v125 = vsel %vm124, %v122, %v119
    %v126 = vadd.f32 %v98, %v116
    %v127 = vadd.f32 %v99, %v125
    %v128 = vlaneseq
    %v129 = vshrl.u32 %v128, 7
    %v130 = vadd.s32 %v129, 8
    %s131 = smul.u32 0, 16
    %v132 = vstv %s131
    %v133 = vadd.s32 %v129, %v132
    %v134 = vadd.s32 %v130, %v132
    %v135 = vlaneseq
    %v136 = vand.u32 %v135, 127
    %s137 = smul.u32 0, 128
    %v138 = vstv %s137
    %v139 = vadd.s32 %v136, %v138
    %vm140 = vcmp.lt.s32.totalorder %v133, 2
    %vm141 = vcmp.lt.s32.totalorder %v134, 2
    %vm142 = vcmp.lt.s32.totalorder %v139, 16
    %vm143 = vmand %vm140, %vm142
    %vm144 = vmand %vm141, %vm142
    %v145 = vsel %vm143, %v126, 0.0
    %v146 = vsel %vm144, %v127, 0.0
    %v147 = vld [vmem:[#allocation2] sm:$0xff]
    %v148 = vld [vmem:[#allocation2 + $0x8] sm:$0xff]
    %v149 = vadd.f32 %v147, %v145
    %v150 = vadd.f32 %v148, %v146
    %151 = vst [vmem:[#allocation2] sm:$0xff] %v149
    %152 = vst [vmem:[#allocation2 + $0x8] sm:$0xff] %v150
    // Predicated region
    $region18: #{tpu_custom_call.1} parent=1 // pred_check
      %p153 = pneg %p26
    $region19: #{tpu_custom_call.1} parent=1 // pred_check_branch
      %155 = sbr.rel (%p153) target = $region21
    $region20: #{tpu_custom_call.1} parent=1 // pred_region
      %v156 = vld [vmem:[#allocation2] sm:$0xff]
      %v157 = vld [vmem:[#allocation2 + $0x8] sm:$0xff]
      %v158 = vadd.f32 %v156, %v157
      %159 = vadd.xlane.f32.xlu0 %v158
      %v160 = vpop.xlane.xlu0 %159
      %v161 = vrot.slane %v160, 4
      %v162 = vadd.f32 %v160, %v161
      %v163 = vrot.slane %v162, 2
      %v164 = vadd.f32 %v162, %v163
      %v165 = vrot.slane %v164, 1
      %v166 = vadd.f32 %v164, %v165
      %s167 = vtos %v166
      %vm168 = vcmp.eq.s32.totalorder %v129, 0
      %vm169 = vcmp.eq.s32.totalorder %v136, 0
      %vm170 = vmand %vm168, %vm169
      %v171 = vstv %s167
      %v172 = vsel %vm170, %v171, 0.0
      %173 = vst [vmem:[#allocation6] sm:$0xff] %v172
    $region21: #{tpu_custom_call.1} parent=1 // pred_fallthru
      _
    // Predicated region
    $region22: #{tpu_custom_call.1} parent=1 // pred_check
      _
    $region23: #{tpu_custom_call.1} parent=1 // pred_check_branch
      %175 = sbr.rel (0) target = $region25
    $region24: #{tpu_custom_call.1} parent=1 // pred_region
      %s177 = ssub.s32 128, 128
      %178 = vsyncadd [#allocation5], %s177
      %s180 = sshll.u32 [#allocation6], 4
      %s181 = int_to_ptr.vmem [resolvable:$true] %s180
      %183 = dma.vmem_to_hbm [thread:$0]  %s181, 128, %s2, [#allocation5]
    $region25: #{tpu_custom_call.1} parent=1 // pred_fallthru
      _
    // Predicated region
    $region26: #{tpu_custom_call.1} parent=1 // pred_check
      _
    $region27: #{tpu_custom_call.1} parent=1 // pred_check_branch
      %185 = sbr.rel (0) target = $region29
    $region28: #{tpu_custom_call.1} parent=1 // pred_region
      %186 = dma.done [#allocation5], 128
    $region29: #{tpu_custom_call.1} parent=1 // pred_fallthru
      _
    %187 = vsyncpa [#allocation4], 1
    %188 = vsyncpa [#allocation5], 1

</llo_original>
